<compile_context>
chip_gen: v5e
topology: v5e:2x2
jax: 0.10.0
libtpu: 0.0.40
codegen_flags: <defaults>
</compile_context>

<pallas_src>
import functools

import jax
import jax.numpy as jnp
from jax.experimental import pallas as pl
from jax.experimental.pallas import tpu as pltpu

LN_EPS = 1e-5
BN_EPS = 1e-5
LANE = 128
SUBLANE = 8


def _round_up(n, m):
    return (n + m - 1) // m * m


def conformer_conv_kernel(x_ref, ln_g_ref, ln_b_ref, w_a1_ref, b_a1_ref,
                          w_a2_ref, b_a2_ref, w_dw_ref, bn_scale_ref,
                          bn_shift_ref, w_b_ref, b_b_ref, o_ref,
                          *, d_true, t_true):
    bb, t_pad, dp = x_ref.shape
    m = bb * t_pad
    kk = w_dw_ref.shape[0]
    pad = (kk - 1) // 2

    # (BB, Tp, Dp) -> (BB*Tp, Dp); Tp % 8 == 0 and Dp % 128 == 0, so the
    # reshape does not cross (8, 128) tile boundaries.
    x = x_ref[...].reshape(m, dp).astype(jnp.float32)

    # ---- LayerNorm over the true channel dim ---------------------------
    # Padded input channels are zero (wrapper), so the plain sum already
    # equals the masked sum; only the variance term needs a channel mask,
    # and only when D is not already lane-aligned.
    inv_d = jnp.float32(1.0 / d_true)
    mean = jnp.sum(x, axis=-1, keepdims=True) * inv_d
    diff = x - mean
    if d_true != dp:
        ch = jax.lax.broadcasted_iota(jnp.int32, (m, dp), 1)
        diff = jnp.where(ch < d_true, diff, 0.0)
    var = jnp.sum(diff * diff, axis=-1, keepdims=True) * inv_d
    xn = diff * jax.lax.rsqrt(var + LN_EPS)
    xn = xn * ln_g_ref[...] + ln_b_ref[...]       # padded gamma/beta are zero

    # ---- PointwiseConv1d_a (kernel_size=1) + GLU -----------------------
    # Two lane-aligned (Dp, Dp) matmuls (value / gate halves); operands cast
    # to the weight dtype (bf16 fast path), accumulation in f32.
    mx = xn.astype(w_a1_ref.dtype)
    a = jnp.dot(mx, w_a1_ref[...], preferred_element_type=jnp.float32) + b_a1_ref[...]
    g = jnp.dot(mx, w_a2_ref[...], preferred_element_type=jnp.float32) + b_a2_ref[...]
    glu = a * jax.nn.sigmoid(g)

    # ---- DepthwiseConv1d ('same' zero padding, groups=D, no bias) ------
    # True data lives at time indices [pad, pad + T) of each batch row
    # (zero halo on both sides, t_pad >= T + 2*pad), so
    #   out[t] = sum_k w[k] * stored[t + k],  t in [0, T)
    # needs no per-tap boundary masks and never crosses a batch row for the
    # rows that are kept.  The halo rows carry LN-beta / bias garbage, so
    # zero them ONCE before the taps.
    if kk > 1:
        row = jax.lax.broadcasted_iota(jnp.int32, (m, dp), 0)
        t_in = jax.lax.rem(row, t_pad)
        tmask = (t_in >= pad) & (t_in < pad + t_true)
        glu = jnp.where(tmask, glu, 0.0)

    w_dw = w_dw_ref[...]                          # (K, Dp)
    acc = glu * w_dw[0][None, :]                  # tap k = 0 (no roll)
    for k in range(1, kk):                        # static taps -> unrolled
        rolled = pltpu.roll(glu, shift=m - k, axis=0)   # rolled[r] = glu[r + k]
        acc = acc + rolled * w_dw[k][None, :]

    # ---- BatchNorm1d (inference: folded scale/shift) + Swish -----------
    bn = acc * bn_scale_ref[...] + bn_shift_ref[...]
    sw = bn * jax.nn.sigmoid(bn)

    # ---- PointwiseConv1d_b (kernel_size=1, bias=True) ------------------
    out = jnp.dot(sw.astype(w_b_ref.dtype), w_b_ref[...],
                  preferred_element_type=jnp.float32) + b_b_ref[...]

    # TODO(synk): nn.Dropout(p=0.1) omitted — identity at inference time.
    o_ref[...] = out.reshape(bb, t_pad, dp).astype(o_ref.dtype)


def conformer_conv_module(x, params, *, block_b=None):
    """x: (B, T, D).  params: dict produced by pack_params()."""
    B, T, D = x.shape
    dp = params["w_b"].shape[0]                   # lane-padded channel count
    K = params["w_dw"].shape[0]
    pad = (K - 1) // 2

    # Time axis with a (K-1)/2 halo on each side, rounded up to sublanes.
    t_pad = _round_up(T + 2 * pad, SUBLANE)
    if block_b is None:
        # Aim for ~512 matmul rows per grid step to fill the MXU pipeline.
        block_b = max(1, min(B, -(-512 // t_pad)))
    b_pad = _round_up(B, block_b)

    xp = jnp.zeros((b_pad, t_pad, dp), jnp.float32)
    xp = xp.at[:B, pad:pad + T, :D].set(x.astype(jnp.float32))

    def const_spec(shape):
        n = len(shape)
        return pl.BlockSpec(shape, lambda b: (0,) * n)

    kernel = functools.partial(conformer_conv_kernel, d_true=D, t_true=T)

    out = pl.pallas_call(
        kernel,
        out_shape=jax.ShapeDtypeStruct((b_pad, t_pad, dp), x.dtype),
        grid=(b_pad // block_b,),
        in_specs=[
            pl.BlockSpec((block_b, t_pad, dp), lambda b: (b, 0, 0)),   # x
            const_spec((1, dp)), const_spec((1, dp)),                  # LN gamma, beta
            const_spec((dp, dp)), const_spec((1, dp)),                 # pointwise-a value half
            const_spec((dp, dp)), const_spec((1, dp)),                 # pointwise-a gate half
            const_spec((K, dp)),                                       # depthwise weights
            const_spec((1, dp)), const_spec((1, dp)),                  # BN scale, shift
            const_spec((dp, dp)), const_spec((1, dp)),                 # pointwise-b
        ],
        out_specs=pl.BlockSpec((block_b, t_pad, dp), lambda b: (b, 0, 0)),
        compiler_params=pltpu.CompilerParams(
            dimension_semantics=("parallel",),
            vmem_limit_bytes=48 * 1024 * 1024,
        ),
    )(xp, params["ln_g"], params["ln_b"], params["w_a1"], params["b_a1"],
      params["w_a2"], params["b_a2"], params["w_dw"], params["bn_scale"],
      params["bn_shift"], params["w_b"], params["b_b"])

    # Output rows live at time indices [0, T) of each batch block.
    return out[:B, :T, :D]


def pack_params(ln_gamma, ln_beta, w_a, b_a, w_dw, bn_gamma, bn_beta,
                bn_rmean, bn_rvar, w_b, b_b, *, matmul_dtype=jnp.float32):
    """Convert PyTorch-layout weights into lane-padded kernel-ready arrays.

    PyTorch shapes:
      ln_gamma, ln_beta : (D,)
      w_a               : (2D, D, 1) Conv1d(D, 2D, 1) weight;  b_a: (2D,)
      w_dw              : (D, 1, K)  Conv1d(D, D, K, groups=D) weight
      bn_*              : (D,)       BatchNorm1d params / running stats
      w_b               : (D, D, 1)  Conv1d(D, D, 1) weight;   b_b: (D,)
    """
    D = ln_gamma.shape[0]
    dp = _round_up(D, LANE)

    w_a2d = jnp.reshape(w_a, (2 * D, D))
    w_dw2d = jnp.reshape(w_dw, (D, -1))
    w_b2d = jnp.reshape(w_b, (D, D))
    K = w_dw2d.shape[1]

    def pad_vec(v):
        return jnp.zeros((1, dp), jnp.float32).at[0, :v.shape[0]].set(
            v.astype(jnp.float32))

    def pad_mat(w):                               # (D_in, D_out) -> (dp, dp)
        return jnp.zeros((dp, dp), matmul_dtype).at[:w.shape[0], :w.shape[1]].set(
            w.astype(matmul_dtype))

    bn_scale = bn_gamma / jnp.sqrt(bn_rvar + BN_EPS)
    bn_shift = bn_beta - bn_rmean * bn_scale

    return {
        "ln_g": pad_vec(ln_gamma),
        "ln_b": pad_vec(ln_beta),
        # GLU(dim=1) on NCT layout: value = channels [0:D], gate = [D:2D].
        "w_a1": pad_mat(w_a2d[:D].T),
        "b_a1": pad_vec(b_a[:D]),
        "w_a2": pad_mat(w_a2d[D:].T),
        "b_a2": pad_vec(b_a[D:]),
        "w_dw": jnp.zeros((K, dp), jnp.float32).at[:, :D].set(w_dw2d.T),
        "bn_scale": pad_vec(bn_scale),
        "bn_shift": pad_vec(bn_shift),
        "w_b": pad_mat(w_b2d.T),
        "b_b": pad_vec(b_b),
    }


def reference(x, ln_gamma, ln_beta, w_a, b_a, w_dw, bn_gamma, bn_beta,
              bn_rmean, bn_rvar, w_b, b_b):
    """Pure-JAX mirror of the PyTorch forward (inference mode)."""
    B, T, D = x.shape
    mean = x.mean(-1, keepdims=True)
    var = ((x - mean) ** 2).mean(-1, keepdims=True)
    xn = (x - mean) / jnp.sqrt(var + LN_EPS) * ln_gamma + ln_beta
    w_a2d = jnp.reshape(w_a, (2 * D, D))
    y = jnp.einsum("btd,ed->bte", xn, w_a2d) + b_a
    glu = y[..., :D] * jax.nn.sigmoid(y[..., D:])
    w_dw2d = jnp.reshape(w_dw, (D, -1))
    K = w_dw2d.shape[1]
    pad = (K - 1) // 2
    gp = jnp.pad(glu, ((0, 0), (pad, pad), (0, 0)))
    dw = sum(gp[:, k:k + T, :] * w_dw2d[:, k][None, None, :] for k in range(K))
    bn_scale = bn_gamma / jnp.sqrt(bn_rvar + BN_EPS)
    bn_shift = bn_beta - bn_rmean * bn_scale
    bn = dw * bn_scale + bn_shift
    sw = bn * jax.nn.sigmoid(bn)
    w_b2d = jnp.reshape(w_b, (D, D))
    return jnp.einsum("btd,ed->bte", sw, w_b2d) + b_b


if __name__ == "__main__":
    # Small shapes consistent with the module: inputs [batch, time, dim].
    B, T, D, K = 2, 16, 8, 7            # kernel_size must be odd; expansion=2
    key = jax.random.PRNGKey(0)
    ks = jax.random.split(key, 12)

    x = jax.random.normal(ks[0], (B, T, D), jnp.float32)

    ln_gamma = jax.random.normal(ks[1], (D,), jnp.float32) * 0.1 + 1.0
    ln_beta = jax.random.normal(ks[2], (D,), jnp.float32) * 0.1
    w_a = jax.random.normal(ks[3], (2 * D, D, 1), jnp.float32) * 0.2     # Conv1d(D, 2D, 1)
    b_a = jax.random.normal(ks[4], (2 * D,), jnp.float32) * 0.1
    w_dw = jax.random.normal(ks[5], (D, 1, K), jnp.float32) * 0.2        # Conv1d(D, D, K, groups=D)
    bn_gamma = jax.random.normal(ks[6], (D,), jnp.float32) * 0.1 + 1.0
    bn_beta = jax.random.normal(ks[7], (D,), jnp.float32) * 0.1
    bn_rmean = jax.random.normal(ks[8], (D,), jnp.float32) * 0.1
    bn_rvar = jax.random.uniform(ks[9], (D,), jnp.float32, minval=0.5, maxval=1.5)
    w_b = jax.random.normal(ks[10], (D, D, 1), jnp.float32) * 0.2        # Conv1d(D, D, 1)
    b_b = jax.random.normal(ks[11], (D,), jnp.float32) * 0.1

    raw = (ln_gamma, ln_beta, w_a, b_a, w_dw, bn_gamma, bn_beta,
           bn_rmean, bn_rvar, w_b, b_b)

    ref = reference(x, *raw)

    # f32 MXU path: numerically faithful to the PyTorch module.
    params_f32 = pack_params(*raw, matmul_dtype=jnp.float32)
    out_f32 = jax.block_until_ready(conformer_conv_module(x, params_f32))
    assert out_f32.shape == (B, T, D)
    assert jnp.allclose(out_f32, ref, atol=1e-4, rtol=1e-4), "f32 kernel mismatch"

    # bf16 MXU path (perf): element-wise math stays f32, matmuls in bf16.
    params_bf16 = pack_params(*raw, matmul_dtype=jnp.bfloat16)
    out_bf16 = jax.block_until_ready(conformer_conv_module(x, params_bf16))
    assert out_bf16.shape == (B, T, D)
    assert jnp.allclose(out_bf16, ref, atol=3e-2, rtol=3e-2), "bf16 kernel mismatch"

    print("KERNEL_OK")
</pallas_src>

<mosaic_0001>
module attributes {stable_mosaic.version = 11 : i64} {
  func.func @conformer_conv_kernel(%arg0: i32, %arg1: memref<2x24x128xf32, #tpu.memory_space<vmem>>, %arg2: memref<1x128xf32, #tpu.memory_space<vmem>>, %arg3: memref<1x128xf32, #tpu.memory_space<vmem>>, %arg4: memref<128x128xf32, #tpu.memory_space<vmem>>, %arg5: memref<1x128xf32, #tpu.memory_space<vmem>>, %arg6: memref<128x128xf32, #tpu.memory_space<vmem>>, %arg7: memref<1x128xf32, #tpu.memory_space<vmem>>, %arg8: memref<7x128xf32, #tpu.memory_space<vmem>>, %arg9: memref<1x128xf32, #tpu.memory_space<vmem>>, %arg10: memref<1x128xf32, #tpu.memory_space<vmem>>, %arg11: memref<128x128xf32, #tpu.memory_space<vmem>>, %arg12: memref<1x128xf32, #tpu.memory_space<vmem>>, %arg13: memref<2x24x128xf32, #tpu.memory_space<vmem>>) attributes {dimension_semantics = [#tpu.dimension_semantics<parallel>], iteration_bounds = array<i64: 1>, scalar_prefetch = 0 : i64, scratch_operands = 0 : i64, tpu.core_type = #tpu.core_type<tc>, window_params = [{transform_indices = @transform_0, window_bounds = array<i64: 2, 24, 128>}, {pipeline_mode = #tpu.pipeline_mode<synchronous>, transform_indices = @transform_1, window_bounds = array<i64: 1, 128>}, {pipeline_mode = #tpu.pipeline_mode<synchronous>, transform_indices = @transform_2, window_bounds = array<i64: 1, 128>}, {pipeline_mode = #tpu.pipeline_mode<synchronous>, transform_indices = @transform_3, window_bounds = array<i64: 128, 128>}, {pipeline_mode = #tpu.pipeline_mode<synchronous>, transform_indices = @transform_4, window_bounds = array<i64: 1, 128>}, {pipeline_mode = #tpu.pipeline_mode<synchronous>, transform_indices = @transform_5, window_bounds = array<i64: 128, 128>}, {pipeline_mode = #tpu.pipeline_mode<synchronous>, transform_indices = @transform_6, window_bounds = array<i64: 1, 128>}, {pipeline_mode = #tpu.pipeline_mode<synchronous>, transform_indices = @transform_7, window_bounds = array<i64: 7, 128>}, {pipeline_mode = #tpu.pipeline_mode<synchronous>, transform_indices = @transform_8, window_bounds = array<i64: 1, 128>}, {pipeline_mode = #tpu.pipeline_mode<synchronous>, transform_indices = @transform_9, window_bounds = array<i64: 1, 128>}, {pipeline_mode = #tpu.pipeline_mode<synchronous>, transform_indices = @transform_10, window_bounds = array<i64: 128, 128>}, {pipeline_mode = #tpu.pipeline_mode<synchronous>, transform_indices = @transform_11, window_bounds = array<i64: 1, 128>}, {transform_indices = @transform_12, window_bounds = array<i64: 2, 24, 128>}]} {
    %c0 = arith.constant 0 : index
    %c0_0 = arith.constant 0 : index
    %c0_1 = arith.constant 0 : index
    %0 = vector.load %arg1[%c0, %c0_0, %c0_1] : memref<2x24x128xf32, #tpu.memory_space<vmem>>, vector<2x24x128xf32>
    %1 = vector.shape_cast %0 : vector<2x24x128xf32> to vector<48x128xf32>
    %cst = arith.constant dense<0.000000e+00> : vector<48xf32>
    %2 = vector.multi_reduction <add>, %1, %cst [1] : vector<48x128xf32> to vector<48xf32>
    %3 = vector.shape_cast %2 : vector<48xf32> to vector<48x1xf32>
    %cst_2 = arith.constant 1.250000e-01 : f32
    %4 = vector.broadcast %cst_2 : f32 to vector<48x1xf32>
    %5 = arith.mulf %3, %4 : vector<48x1xf32>
    %6 = vector.broadcast %5 : vector<48x1xf32> to vector<48x128xf32>
    %7 = arith.subf %1, %6 : vector<48x128xf32>
    %8 = tpu.iota {dimensions = array<i32: 1>} : vector<48x128xi32>
    %c8_i32 = arith.constant 8 : i32
    %9 = vector.broadcast %c8_i32 : i32 to vector<48x128xi32>
    %10 = arith.cmpi slt, %8, %9 : vector<48x128xi32>
    %cst_3 = arith.constant 0.000000e+00 : f32
    %11 = vector.broadcast %cst_3 : f32 to vector<48x128xf32>
    %12 = arith.select %10, %7, %11 : vector<48x128xi1>, vector<48x128xf32>
    %13 = arith.mulf %12, %12 : vector<48x128xf32>
    %cst_4 = arith.constant dense<0.000000e+00> : vector<48xf32>
    %14 = vector.multi_reduction <add>, %13, %cst_4 [1] : vector<48x128xf32> to vector<48xf32>
    %15 = vector.shape_cast %14 : vector<48xf32> to vector<48x1xf32>
    %cst_5 = arith.constant 1.250000e-01 : f32
    %16 = vector.broadcast %cst_5 : f32 to vector<48x1xf32>
    %17 = arith.mulf %15, %16 : vector<48x1xf32>
    %cst_6 = arith.constant 9.99999974E-6 : f32
    %18 = vector.broadcast %cst_6 : f32 to vector<48x1xf32>
    %19 = arith.addf %17, %18 : vector<48x1xf32>
    %20 = math.rsqrt %19 : vector<48x1xf32>
    %21 = vector.broadcast %20 : vector<48x1xf32> to vector<48x128xf32>
    %22 = arith.mulf %12, %21 : vector<48x128xf32>
    %c0_7 = arith.constant 0 : index
    %c0_8 = arith.constant 0 : index
    %23 = vector.load %arg2[%c0_7, %c0_8] : memref<1x128xf32, #tpu.memory_space<vmem>>, vector<1x128xf32>
    %24 = vector.broadcast %23 : vector<1x128xf32> to vector<48x128xf32>
    %25 = arith.mulf %22, %24 : vector<48x128xf32>
    %c0_9 = arith.constant 0 : index
    %c0_10 = arith.constant 0 : index
    %26 = vector.load %arg3[%c0_9, %c0_10] : memref<1x128xf32, #tpu.memory_space<vmem>>, vector<1x128xf32>
    %27 = vector.broadcast %26 : vector<1x128xf32> to vector<48x128xf32>
    %28 = arith.addf %25, %27 : vector<48x128xf32>
    %c0_11 = arith.constant 0 : index
    %c0_12 = arith.constant 0 : index
    %29 = vector.load %arg4[%c0_11, %c0_12] : memref<128x128xf32, #tpu.memory_space<vmem>>, vector<128x128xf32>
    %cst_13 = arith.constant dense<0.000000e+00> : vector<48x128xf32>
    %30 = tpu.matmul %28, %29, %cst_13 {dimension_numbers = #tpu.dot_dimension_numbers<[1], [0], [0], [1], [0, 0, 1, 1], [], []>} : vector<48x128xf32>, vector<128x128xf32>, vector<48x128xf32> -> vector<48x128xf32>
    %c0_14 = arith.constant 0 : index
    %c0_15 = arith.constant 0 : index
    %31 = vector.load %arg5[%c0_14, %c0_15] : memref<1x128xf32, #tpu.memory_space<vmem>>, vector<1x128xf32>
    %32 = vector.broadcast %31 : vector<1x128xf32> to vector<48x128xf32>
    %33 = arith.addf %30, %32 : vector<48x128xf32>
    %c0_16 = arith.constant 0 : index
    %c0_17 = arith.constant 0 : index
    %34 = vector.load %arg6[%c0_16, %c0_17] : memref<128x128xf32, #tpu.memory_space<vmem>>, vector<128x128xf32>
    %cst_18 = arith.constant dense<0.000000e+00> : vector<48x128xf32>
    %35 = tpu.matmul %28, %34, %cst_18 {dimension_numbers = #tpu.dot_dimension_numbers<[1], [0], [0], [1], [0, 0, 1, 1], [], []>} : vector<48x128xf32>, vector<128x128xf32>, vector<48x128xf32> -> vector<48x128xf32>
    %c0_19 = arith.constant 0 : index
    %c0_20 = arith.constant 0 : index
    %36 = vector.load %arg7[%c0_19, %c0_20] : memref<1x128xf32, #tpu.memory_space<vmem>>, vector<1x128xf32>
    %37 = vector.broadcast %36 : vector<1x128xf32> to vector<48x128xf32>
    %38 = arith.addf %35, %37 : vector<48x128xf32>
    %39 = arith.negf %38 : vector<48x128xf32>
    %40 = math.exp %39 : vector<48x128xf32>
    %cst_21 = arith.constant 1.000000e+00 : f32
    %41 = vector.broadcast %cst_21 : f32 to vector<48x128xf32>
    %42 = arith.addf %41, %40 : vector<48x128xf32>
    %43 = arith.divf %41, %42 : vector<48x128xf32>
    %44 = arith.mulf %33, %43 : vector<48x128xf32>
    %45 = tpu.iota {dimensions = array<i32: 0>} : vector<48x128xi32>
    %c24_i32 = arith.constant 24 : i32
    %46 = vector.broadcast %c24_i32 : i32 to vector<48x128xi32>
    %47 = arith.remsi %45, %46 : vector<48x128xi32>
    %c3_i32 = arith.constant 3 : i32
    %48 = vector.broadcast %c3_i32 : i32 to vector<48x128xi32>
    %49 = arith.cmpi sge, %47, %48 : vector<48x128xi32>
    %c19_i32 = arith.constant 19 : i32
    %50 = vector.broadcast %c19_i32 : i32 to vector<48x128xi32>
    %51 = arith.cmpi slt, %47, %50 : vector<48x128xi32>
    %52 = arith.andi %49, %51 : vector<48x128xi1>
    %cst_22 = arith.constant 0.000000e+00 : f32
    %53 = vector.broadcast %cst_22 : f32 to vector<48x128xf32>
    %54 = arith.select %52, %44, %53 : vector<48x128xi1>, vector<48x128xf32>
    %c0_23 = arith.constant 0 : index
    %c0_24 = arith.constant 0 : index
    %55 = vector.load %arg8[%c0_23, %c0_24] : memref<7x128xf32, #tpu.memory_space<vmem>>, vector<7x128xf32>
    %56 = vector.extract_strided_slice %55 {offsets = [0, 0], sizes = [1, 128], strides = [1, 1]} : vector<7x128xf32> to vector<1x128xf32>
    %57 = vector.shape_cast %56 : vector<1x128xf32> to vector<128xf32>
    %58 = vector.shape_cast %57 : vector<128xf32> to vector<1x128xf32>
    %59 = vector.broadcast %58 : vector<1x128xf32> to vector<48x128xf32>
    %60 = arith.mulf %54, %59 : vector<48x128xf32>
    %c47_i32 = arith.constant 47 : i32
    %61 = tpu.dynamic_rotate %54 by %c47_i32 dim 0 : vector<48x128xf32>, i32 -> vector<48x128xf32>
    %62 = vector.extract_strided_slice %55 {offsets = [1, 0], sizes = [1, 128], strides = [1, 1]} : vector<7x128xf32> to vector<1x128xf32>
    %63 = vector.shape_cast %62 : vector<1x128xf32> to vector<128xf32>
    %64 = vector.shape_cast %63 : vector<128xf32> to vector<1x128xf32>
    %65 = vector.broadcast %64 : vector<1x128xf32> to vector<48x128xf32>
    %66 = arith.mulf %61, %65 : vector<48x128xf32>
    %67 = arith.addf %60, %66 : vector<48x128xf32>
    %c46_i32 = arith.constant 46 : i32
    %68 = tpu.dynamic_rotate %54 by %c46_i32 dim 0 : vector<48x128xf32>, i32 -> vector<48x128xf32>
    %69 = vector.extract_strided_slice %55 {offsets = [2, 0], sizes = [1, 128], strides = [1, 1]} : vector<7x128xf32> to vector<1x128xf32>
    %70 = vector.shape_cast %69 : vector<1x128xf32> to vector<128xf32>
    %71 = vector.shape_cast %70 : vector<128xf32> to vector<1x128xf32>
    %72 = vector.broadcast %71 : vector<1x128xf32> to vector<48x128xf32>
    %73 = arith.mulf %68, %72 : vector<48x128xf32>
    %74 = arith.addf %67, %73 : vector<48x128xf32>
    %c45_i32 = arith.constant 45 : i32
    %75 = tpu.dynamic_rotate %54 by %c45_i32 dim 0 : vector<48x128xf32>, i32 -> vector<48x128xf32>
    %76 = vector.extract_strided_slice %55 {offsets = [3, 0], sizes = [1, 128], strides = [1, 1]} : vector<7x128xf32> to vector<1x128xf32>
    %77 = vector.shape_cast %76 : vector<1x128xf32> to vector<128xf32>
    %78 = vector.shape_cast %77 : vector<128xf32> to vector<1x128xf32>
    %79 = vector.broadcast %78 : vector<1x128xf32> to vector<48x128xf32>
    %80 = arith.mulf %75, %79 : vector<48x128xf32>
    %81 = arith.addf %74, %80 : vector<48x128xf32>
    %c44_i32 = arith.constant 44 : i32
    %82 = tpu.dynamic_rotate %54 by %c44_i32 dim 0 : vector<48x128xf32>, i32 -> vector<48x128xf32>
    %83 = vector.extract_strided_slice %55 {offsets = [4, 0], sizes = [1, 128], strides = [1, 1]} : vector<7x128xf32> to vector<1x128xf32>
    %84 = vector.shape_cast %83 : vector<1x128xf32> to vector<128xf32>
    %85 = vector.shape_cast %84 : vector<128xf32> to vector<1x128xf32>
    %86 = vector.broadcast %85 : vector<1x128xf32> to vector<48x128xf32>
    %87 = arith.mulf %82, %86 : vector<48x128xf32>
    %88 = arith.addf %81, %87 : vector<48x128xf32>
    %c43_i32 = arith.constant 43 : i32
    %89 = tpu.dynamic_rotate %54 by %c43_i32 dim 0 : vector<48x128xf32>, i32 -> vector<48x128xf32>
    %90 = vector.extract_strided_slice %55 {offsets = [5, 0], sizes = [1, 128], strides = [1, 1]} : vector<7x128xf32> to vector<1x128xf32>
    %91 = vector.shape_cast %90 : vector<1x128xf32> to vector<128xf32>
    %92 = vector.shape_cast %91 : vector<128xf32> to vector<1x128xf32>
    %93 = vector.broadcast %92 : vector<1x128xf32> to vector<48x128xf32>
    %94 = arith.mulf %89, %93 : vector<48x128xf32>
    %95 = arith.addf %88, %94 : vector<48x128xf32>
    %c42_i32 = arith.constant 42 : i32
    %96 = tpu.dynamic_rotate %54 by %c42_i32 dim 0 : vector<48x128xf32>, i32 -> vector<48x128xf32>
    %97 = vector.extract_strided_slice %55 {offsets = [6, 0], sizes = [1, 128], strides = [1, 1]} : vector<7x128xf32> to vector<1x128xf32>
    %98 = vector.shape_cast %97 : vector<1x128xf32> to vector<128xf32>
    %99 = vector.shape_cast %98 : vector<128xf32> to vector<1x128xf32>
    %100 = vector.broadcast %99 : vector<1x128xf32> to vector<48x128xf32>
    %101 = arith.mulf %96, %100 : vector<48x128xf32>
    %102 = arith.addf %95, %101 : vector<48x128xf32>
    %c0_25 = arith.constant 0 : index
    %c0_26 = arith.constant 0 : index
    %103 = vector.load %arg9[%c0_25, %c0_26] : memref<1x128xf32, #tpu.memory_space<vmem>>, vector<1x128xf32>
    %104 = vector.broadcast %103 : vector<1x128xf32> to vector<48x128xf32>
    %105 = arith.mulf %102, %104 : vector<48x128xf32>
    %c0_27 = arith.constant 0 : index
    %c0_28 = arith.constant 0 : index
    %106 = vector.load %arg10[%c0_27, %c0_28] : memref<1x128xf32, #tpu.memory_space<vmem>>, vector<1x128xf32>
    %107 = vector.broadcast %106 : vector<1x128xf32> to vector<48x128xf32>
    %108 = arith.addf %105, %107 : vector<48x128xf32>
    %109 = arith.negf %108 : vector<48x128xf32>
    %110 = math.exp %109 : vector<48x128xf32>
    %cst_29 = arith.constant 1.000000e+00 : f32
    %111 = vector.broadcast %cst_29 : f32 to vector<48x128xf32>
    %112 = arith.addf %111, %110 : vector<48x128xf32>
    %113 = arith.divf %111, %112 : vector<48x128xf32>
    %114 = arith.mulf %108, %113 : vector<48x128xf32>
    %c0_30 = arith.constant 0 : index
    %c0_31 = arith.constant 0 : index
    %115 = vector.load %arg11[%c0_30, %c0_31] : memref<128x128xf32, #tpu.memory_space<vmem>>, vector<128x128xf32>
    %cst_32 = arith.constant dense<0.000000e+00> : vector<48x128xf32>
    %116 = tpu.matmul %114, %115, %cst_32 {dimension_numbers = #tpu.dot_dimension_numbers<[1], [0], [0], [1], [0, 0, 1, 1], [], []>} : vector<48x128xf32>, vector<128x128xf32>, vector<48x128xf32> -> vector<48x128xf32>
    %c0_33 = arith.constant 0 : index
    %c0_34 = arith.constant 0 : index
    %117 = vector.load %arg12[%c0_33, %c0_34] : memref<1x128xf32, #tpu.memory_space<vmem>>, vector<1x128xf32>
    %118 = vector.broadcast %117 : vector<1x128xf32> to vector<48x128xf32>
    %119 = arith.addf %116, %118 : vector<48x128xf32>
    %120 = vector.shape_cast %119 : vector<48x128xf32> to vector<2x24x128xf32>
    %c0_35 = arith.constant 0 : index
    %c0_36 = arith.constant 0 : index
    %c0_37 = arith.constant 0 : index
    %121 = vector.load %arg13[%c0_35, %c0_36, %c0_37] : memref<2x24x128xf32, #tpu.memory_space<vmem>>, vector<2x24x128xf32>
    tpu.vector_store %arg13[%c0_35, %c0_36, %c0_37], %120 {strides = array<i32>} : memref<2x24x128xf32, #tpu.memory_space<vmem>>, vector<2x24x128xf32>,
    return
  }
  func.func @transform_0(%arg0: i32) -> (i32, i32, i32) {
    %c0_i32 = arith.constant 0 : i32
    %c0_i32_0 = arith.constant 0 : i32
    %c0_i32_1 = arith.constant 0 : i32
    return %arg0, %c0_i32, %c0_i32_0 : i32, i32, i32
  }
  func.func @transform_1(%arg0: i32) -> (i32, i32) {
    %c0_i32 = arith.constant 0 : i32
    %c0_i32_0 = arith.constant 0 : i32
    %c0_i32_1 = arith.constant 0 : i32
    return %c0_i32, %c0_i32_0 : i32, i32
  }
  func.func @transform_2(%arg0: i32) -> (i32, i32) {
    %c0_i32 = arith.constant 0 : i32
    %c0_i32_0 = arith.constant 0 : i32
    %c0_i32_1 = arith.constant 0 : i32
    return %c0_i32, %c0_i32_0 : i32, i32
  }
  func.func @transform_3(%arg0: i32) -> (i32, i32) {
    %c0_i32 = arith.constant 0 : i32
    %c0_i32_0 = arith.constant 0 : i32
    %c0_i32_1 = arith.constant 0 : i32
    return %c0_i32, %c0_i32_0 : i32, i32
  }
  func.func @transform_4(%arg0: i32) -> (i32, i32) {
    %c0_i32 = arith.constant 0 : i32
    %c0_i32_0 = arith.constant 0 : i32
    %c0_i32_1 = arith.constant 0 : i32
    return %c0_i32, %c0_i32_0 : i32, i32
  }
  func.func @transform_5(%arg0: i32) -> (i32, i32) {
    %c0_i32 = arith.constant 0 : i32
    %c0_i32_0 = arith.constant 0 : i32
    %c0_i32_1 = arith.constant 0 : i32
    return %c0_i32, %c0_i32_0 : i32, i32
  }
  func.func @transform_6(%arg0: i32) -> (i32, i32) {
    %c0_i32 = arith.constant 0 : i32
    %c0_i32_0 = arith.constant 0 : i32
    %c0_i32_1 = arith.constant 0 : i32
    return %c0_i32, %c0_i32_0 : i32, i32
  }
  func.func @transform_7(%arg0: i32) -> (i32, i32) {
    %c0_i32 = arith.constant 0 : i32
    %c0_i32_0 = arith.constant 0 : i32
    %c0_i32_1 = arith.constant 0 : i32
    return %c0_i32, %c0_i32_0 : i32, i32
  }
  func.func @transform_8(%arg0: i32) -> (i32, i32) {
    %c0_i32 = arith.constant 0 : i32
    %c0_i32_0 = arith.constant 0 : i32
    %c0_i32_1 = arith.constant 0 : i32
    return %c0_i32, %c0_i32_0 : i32, i32
  }
  func.func @transform_9(%arg0: i32) -> (i32, i32) {
    %c0_i32 = arith.constant 0 : i32
    %c0_i32_0 = arith.constant 0 : i32
    %c0_i32_1 = arith.constant 0 : i32
    return %c0_i32, %c0_i32_0 : i32, i32
  }
  func.func @transform_10(%arg0: i32) -> (i32, i32) {
    %c0_i32 = arith.constant 0 : i32
    %c0_i32_0 = arith.constant 0 : i32
    %c0_i32_1 = arith.constant 0 : i32
    return %c0_i32, %c0_i32_0 : i32, i32
  }
  func.func @transform_11(%arg0: i32) -> (i32, i32) {
    %c0_i32 = arith.constant 0 : i32
    %c0_i32_0 = arith.constant 0 : i32
    %c0_i32_1 = arith.constant 0 : i32
    return %c0_i32, %c0_i32_0 : i32, i32
  }
  func.func @transform_12(%arg0: i32) -> (i32, i32, i32) {
    %c0_i32 = arith.constant 0 : i32
    %c0_i32_0 = arith.constant 0 : i32
    %c0_i32_1 = arith.constant 0 : i32
    return %arg0, %c0_i32, %c0_i32_0 : i32, i32, i32
  }
}

</mosaic_0001>

<llo_original>
// kernel: tpu_custom_call.1
$region0: #{tpu_custom_call.1}
  #allocation0 [shape = 'u32[]', space=smem, size = 0x4, offset = 0x4, fixed_abs, tag = 'smem constant byte address 0x4 - core index']
  #allocation1 [shape = 'u32[72,128]{1,0:T(1,128)}', space=vmem, size = 0x9000, scoped, tag = 'internal scratch']
  %s0 = inlined_call_operand.hbm [shape: f32[2,24,128], index: 0, kind: input, shape index: {}]
  %s1 = inlined_call_operand.hbm [shape: f32[1,128], index: 1, kind: input, shape index: {}]
  %s2 = inlined_call_operand.vmem [shape: f32[1,128], index: 2, kind: input, shape index: {}]
  %s3 = inlined_call_operand.hbm [shape: f32[128,128], index: 3, kind: input, shape index: {}]
  %s4 = inlined_call_operand.vmem [shape: f32[1,128], index: 4, kind: input, shape index: {}]
  %s5 = inlined_call_operand.hbm [shape: f32[128,128], index: 5, kind: input, shape index: {}]
  %s6 = inlined_call_operand.vmem [shape: f32[1,128], index: 6, kind: input, shape index: {}]
  %s7 = inlined_call_operand.hbm [shape: f32[7,128], index: 7, kind: input, shape index: {}]
  %s8 = inlined_call_operand.vmem [shape: f32[1,128], index: 8, kind: input, shape index: {}]
  %s9 = inlined_call_operand.vmem [shape: f32[1,128], index: 9, kind: input, shape index: {}]
  %s10 = inlined_call_operand.hbm [shape: f32[128,128], index: 10, kind: input, shape index: {}]
  %s11 = inlined_call_operand.vmem [shape: f32[1,128], index: 11, kind: input, shape index: {}]
  %s12 = inlined_call_operand.hbm [shape: f32[2,24,128], index: 12, kind: output, shape index: {}]
  %s13 = sld [smem:[#allocation0]]
  $region82: #{tpu_custom_call.1} parent=0
    _
  %s15 = ssub.s32 1, %s13
  %s16 = scalar_select 0, %s15, %s13
  $region1: #{tpu_custom_call.1} parent=0
    #allocation2 [shape = 'u8[24576]{0}', space=vmem, size = 0x6000, scoped, tag = 'input window, operand 0, single buffered']
    #allocation3 [shape = 's32[1]{0}', space=sflag, size = 0x4, scoped, tag = 'scoped memory for tpu_custom_call.1']
    #allocation4 [shape = 's32[1]{0}', space=sflag, size = 0x4, scoped, tag = 'scoped memory for tpu_custom_call.1']
    #allocation5 [shape = 'u8[512]{0}', space=vmem, size = 0x400, scoped, tag = 'input window, operand 1, single buffered']
    #allocation6 [shape = 's32[1]{0}', space=sflag, size = 0x4, scoped, tag = 'scoped memory for tpu_custom_call.1']
    #allocation7 [shape = 'u8[65536]{0}', space=vmem, size = 0x10000, scoped, tag = 'input window, operand 3, single buffered']
    #allocation8 [shape = 'u8[65536]{0}', space=vmem, size = 0x10000, scoped, tag = 'input window, operand 5, single buffered']
    #allocation9 [shape = 's32[1]{0}', space=sflag, size = 0x4, scoped, tag = 'scoped memory for tpu_custom_call.1']
    #allocation10 [shape = 'u8[4096]{0}', space=vmem, size = 0x1000, scoped, tag = 'input window, operand 7, single buffered']
    #allocation11 [shape = 'u8[65536]{0}', space=vmem, size = 0x10000, scoped, tag = 'input window, operand 10, single buffered']
    #allocation12 [shape = 's32[1]{0}', space=sflag, size = 0x4, scoped, tag = 'scoped memory for tpu_custom_call.1']
    #allocation13 [shape = 'u8[24576]{0}', space=vmem, size = 0x6000, scoped, tag = 'output window, operand 0, single buffered']
    %17 = vsyncpa [#allocation3], 0
    %18 = vsyncpa [#allocation6], 0
    %19 = vsyncpa [#allocation9], 0
    %20 = vsyncpa [#allocation12], 0
    %21 = vsyncpa [#allocation4], 0
    // Predicated region
    $region2: #{tpu_custom_call.1} parent=1 // pred_check
      _
    $region3: #{tpu_custom_call.1} parent=1 // pred_check_branch
      %23 = sbr.rel (0) target = $region5
    $region4: #{tpu_custom_call.1} parent=1 // pred_region
      %25 = vsyncadd [#allocation3], 0
      %s26 = sshll.u32 %s0, 4
      %s27 = int_to_ptr.hbm [resolvable:$true] %s26
      %s28 = sshll.u32 [#allocation2], 4
      %s29 = int_to_ptr.vmem [resolvable:$true] %s28
      %34 = dma.hbm_to_vmem [thread:$0]  %s27, 768, %s29, [#allocation3], 128, 128, 8
    $region5: #{tpu_custom_call.1} parent=1 // pred_fallthru
      _
    // Predicated region
    $region6: #{tpu_custom_call.1} parent=1 // pred_check
      _
    $region7: #{tpu_custom_call.1} parent=1 // pred_check_branch
      %36 = sbr.rel (0) target = $region9
    $region8: #{tpu_custom_call.1} parent=1 // pred_region
      %38 = vsyncadd [#allocation6], 0
      %s40 = sshll.u32 %s1, 4
      %s41 = int_to_ptr.hbm [resolvable:$true] %s40
      %s42 = sshll.u32 [#allocation5], 4
      %s43 = int_to_ptr.vmem [resolvable:$true] %s42
      %45 = dma.hbm_to_vmem [thread:$0]  %s41, 16, %s43, [#allocation6]
    $region9: #{tpu_custom_call.1} parent=1 // pred_fallthru
      _
    // Predicated region
    $region10: #{tpu_custom_call.1} parent=1 // pred_check
      _
    $region11: #{tpu_custom_call.1} parent=1 // pred_check_branch
      %47 = sbr.rel (0) target = $region13
    $region12: #{tpu_custom_call.1} parent=1 // pred_region
      _
    $region13: #{tpu_custom_call.1} parent=1 // pred_fallthru
      _
    // Predicated region
    $region14: #{tpu_custom_call.1} parent=1 // pred_check
      _
    $region15: #{tpu_custom_call.1} parent=1 // pred_check_branch
      %49 = sbr.rel (0) target = $region17
    $region16: #{tpu_custom_call.1} parent=1 // pred_region
      %51 = vsyncadd [#allocation6], 0
      %s52 = sshll.u32 %s3, 4
      %s53 = int_to_ptr.hbm [resolvable:$true] %s52
      %s54 = sshll.u32 [#allocation7], 4
      %s55 = int_to_ptr.vmem [resolvable:$true] %s54
      %60 = dma.hbm_to_vmem [thread:$0]  %s53, 2048, %s55, [#allocation6], 128, 128, 8
    $region17: #{tpu_custom_call.1} parent=1 // pred_fallthru
      _
    // Predicated region
    $region18: #{tpu_custom_call.1} parent=1 // pred_check
      _
    $region19: #{tpu_custom_call.1} parent=1 // pred_check_branch
      %62 = sbr.rel (0) target = $region21
    $region20: #{tpu_custom_call.1} parent=1 // pred_region
      _
    $region21: #{tpu_custom_call.1} parent=1 // pred_fallthru
      _
    // Predicated region
    $region22: #{tpu_custom_call.1} parent=1 // pred_check
      _
    $region23: #{tpu_custom_call.1} parent=1 // pred_check_branch
      %64 = sbr.rel (0) target = $region25
    $region24: #{tpu_custom_call.1} parent=1 // pred_region
      %66 = vsyncadd [#allocation9], 0
      %s67 = sshll.u32 %s5, 4
      %s68 = int_to_ptr.hbm [resolvable:$true] %s67
      %s69 = sshll.u32 [#allocation8], 4
      %s70 = int_to_ptr.vmem [resolvable:$true] %s69
      %75 = dma.hbm_to_vmem [thread:$0]  %s68, 2048, %s70, [#allocation9], 128, 128, 8
    $region25: #{tpu_custom_call.1} parent=1 // pred_fallthru
      _
    // Predicated region
    $region26: #{tpu_custom_call.1} parent=1 // pred_check
      _
    $region27: #{tpu_custom_call.1} parent=1 // pred_check_branch
      %77 = sbr.rel (0) target = $region29
    $region28: #{tpu_custom_call.1} parent=1 // pred_region
      _
    $region29: #{tpu_custom_call.1} parent=1 // pred_fallthru
      _
    // Predicated region
    $region30: #{tpu_custom_call.1} parent=1 // pred_check
      _
    $region31: #{tpu_custom_call.1} parent=1 // pred_check_branch
      %79 = sbr.rel (0) target = $region33
    $region32: #{tpu_custom_call.1} parent=1 // pred_region
      %81 = vsyncadd [#allocation9], 0
      %s83 = sshll.u32 %s7, 4
      %s84 = int_to_ptr.hbm [resolvable:$true] %s83
      %s85 = sshll.u32 [#allocation10], 4
      %s86 = int_to_ptr.vmem [resolvable:$true] %s85
      %88 = dma.hbm_to_vmem [thread:$0]  %s84, 128, %s86, [#allocation9]
    $region33: #{tpu_custom_call.1} parent=1 // pred_fallthru
      _
    // Predicated region
    $region34: #{tpu_custom_call.1} parent=1 // pred_check
      _
    $region35: #{tpu_custom_call.1} parent=1 // pred_check_branch
      %90 = sbr.rel (0) target = $region37
    $region36: #{tpu_custom_call.1} parent=1 // pred_region
      _
    $region37: #{tpu_custom_call.1} parent=1 // pred_fallthru
      _
    // Predicated region
    $region38: #{tpu_custom_call.1} parent=1 // pred_check
      _
    $region39: #{tpu_custom_call.1} parent=1 // pred_check_branch
      %92 = sbr.rel (0) target = $region41
    $region40: #{tpu_custom_call.1} parent=1 // pred_region
      _
    $region41: #{tpu_custom_call.1} parent=1 // pred_fallthru
      _
    // Predicated region
    $region42: #{tpu_custom_call.1} parent=1 // pred_check
      _
    $region43: #{tpu_custom_call.1} parent=1 // pred_check_branch
      %94 = sbr.rel (0) target = $region45
    $region44: #{tpu_custom_call.1} parent=1 // pred_region
      %96 = vsyncadd [#allocation12], 0
      %s97 = sshll.u32 %s10, 4
      %s98 = int_to_ptr.hbm [resolvable:$true] %s97
      %s99 = sshll.u32 [#allocation11], 4
      %s100 = int_to_ptr.vmem [resolvable:$true] %s99
      %105 = dma.hbm_to_vmem [thread:$0]  %s98, 2048, %s100, [#allocation12], 128, 128, 8
    $region45: #{tpu_custom_call.1} parent=1 // pred_fallthru
      _
    // Predicated region
    $region46: #{tpu_custom_call.1} parent=1 // pred_check
      _
    $region47: #{tpu_custom_call.1} parent=1 // pred_check_branch
      %107 = sbr.rel (0) target = $region49
    $region48: #{tpu_custom_call.1} parent=1 // pred_region
      _
    $region49: #{tpu_custom_call.1} parent=1 // pred_fallthru
      _
    // Predicated region
    $region50: #{tpu_custom_call.1} parent=1 // pred_check
      _
    $region51: #{tpu_custom_call.1} parent=1 // pred_check_branch
      %109 = sbr.rel (0) target = $region53
    $region52: #{tpu_custom_call.1} parent=1 // pred_region
      %111 = dma.done [#allocation3], 768
    $region53: #{tpu_custom_call.1} parent=1 // pred_fallthru
      _
    // Predicated region
    $region54: #{tpu_custom_call.1} parent=1 // pred_check
      _
    $region55: #{tpu_custom_call.1} parent=1 // pred_check_branch
      %113 = sbr.rel (0) target = $region57
    $region56: #{tpu_custom_call.1} parent=1 // pred_region
      %115 = dma.done [#allocation6], 16
    $region57: #{tpu_custom_call.1} parent=1 // pred_fallthru
      _
    // Predicated region
    $region58: #{tpu_custom_call.1} parent=1 // pred_check
      _
    $region59: #{tpu_custom_call.1} parent=1 // pred_check_branch
      %117 = sbr.rel (0) target = $region61
    $region60: #{tpu_custom_call.1} parent=1 // pred_region
      %119 = dma.done [#allocation6], 2048
    $region61: #{tpu_custom_call.1} parent=1 // pred_fallthru
      _
    // Predicated region
    $region62: #{tpu_custom_call.1} parent=1 // pred_check
      _
    $region63: #{tpu_custom_call.1} parent=1 // pred_check_branch
      %121 = sbr.rel (0) target = $region65
    $region64: #{tpu_custom_call.1} parent=1 // pred_region
      %123 = dma.done [#allocation9], 2048
    $region65: #{tpu_custom_call.1} parent=1 // pred_fallthru
      _
    // Predicated region
    $region66: #{tpu_custom_call.1} parent=1 // pred_check
      _
    $region67: #{tpu_custom_call.1} parent=1 // pred_check_branch
      %125 = sbr.rel (0) target = $region69
    $region68: #{tpu_custom_call.1} parent=1 // pred_region
      %127 = dma.done [#allocation9], 128
    $region69: #{tpu_custom_call.1} parent=1 // pred_fallthru
      _
    // Predicated region
    $region70: #{tpu_custom_call.1} parent=1 // pred_check
      _
    $region71: #{tpu_custom_call.1} parent=1 // pred_check_branch
      %129 = sbr.rel (0) target = $region73
    $region72: #{tpu_custom_call.1} parent=1 // pred_region
      %131 = dma.done [#allocation12], 2048
    $region73: #{tpu_custom_call.1} parent=1 // pred_fallthru
      _
    %v132 = vld [vmem:[#allocation2] sm:$0xff]
    %v133 = vld [vmem:[#allocation2 + $0x8] sm:$0xff]
    %v134 = vld [vmem:[#allocation2 + $0x10] sm:$0xff]
    %v135 = vld [vmem:[#allocation2 + $0x18] sm:$0xff]
    %v136 = vld [vmem:[#allocation2 + $0x20] sm:$0xff]
    %v137 = vld [vmem:[#allocation2 + $0x28] sm:$0xff]
    %138 = vadd.xlane.f32.xlu0 %v132
    %v139 = vpop.xlane.xlu0 %138
    %140 = vadd.xlane.f32.xlu0 %v133
    %v141 = vpop.xlane.xlu0 %140
    %142 = vadd.xlane.f32.xlu0 %v134
    %v143 = vpop.xlane.xlu0 %142
    %144 = vadd.xlane.f32.xlu0 %v135
    %v145 = vpop.xlane.xlu0 %144
    %146 = vadd.xlane.f32.xlu0 %v136
    %v147 = vpop.xlane.xlu0 %146
    %148 = vadd.xlane.f32.xlu0 %v137
    %v149 = vpop.xlane.xlu0 %148
    %v150 = vmul.f32 %v139, 0.125
    %v151 = vmul.f32 %v141, 0.125
    %v152 = vmul.f32 %v143, 0.125
    %v153 = vmul.f32 %v145, 0.125
    %v154 = vmul.f32 %v147, 0.125
    %v155 = vmul.f32 %v149, 0.125
    %v156 = vsub.f32 %v132, %v150
    %v157 = vsub.f32 %v133, %v151
    %v158 = vsub.f32 %v134, %v152
    %v159 = vsub.f32 %v135, %v153
    %v160 = vsub.f32 %v136, %v154
    %v161 = vsub.f32 %v137, %v155
    %v162 = vlaneseq
    %v163 = vand.u32 %v162, 127
    %vm164 = vcmp.lt.s32.totalorder %v163, 8
    %v165 = vsel %vm164, %v156, 0.0
    %v166 = vsel %vm164, %v157, 0.0
    %v167 = vsel %vm164, %v158, 0.0
    %v168 = vsel %vm164, %v159, 0.0
    %v169 = vsel %vm164, %v160, 0.0
    %v170 = vsel %vm164, %v161, 0.0
    %v171 = vmul.f32 %v165, %v165
    %v172 = vmul.f32 %v166, %v166
    %v173 = vmul.f32 %v167, %v167
    %v174 = vmul.f32 %v168, %v168
    %v175 = vmul.f32 %v169, %v169
    %v176 = vmul.f32 %v170, %v170
    %177 = vadd.xlane.f32.xlu0 %v171
    %v178 = vpop.xlane.xlu0 %177
    %179 = vadd.xlane.f32.xlu0 %v172
    %v180 = vpop.xlane.xlu0 %179
    %181 = vadd.xlane.f32.xlu0 %v173
    %v182 = vpop.xlane.xlu0 %181
    %183 = vadd.xlane.f32.xlu0 %v174
    %v184 = vpop.xlane.xlu0 %183
    %185 = vadd.xlane.f32.xlu0 %v175
    %v186 = vpop.xlane.xlu0 %185
    %187 = vadd.xlane.f32.xlu0 %v176
    %v188 = vpop.xlane.xlu0 %187
    %v189 = vmul.f32 %v178, 0.125
    %v190 = vmul.f32 %v180, 0.125
    %v191 = vmul.f32 %v182, 0.125
    %v192 = vmul.f32 %v184, 0.125
    %v193 = vmul.f32 %v186, 0.125
    %v194 = vmul.f32 %v188, 0.125
    %v195 = vadd.f32 %v189, 1e-05
    %v196 = vadd.f32 %v190, 1e-05
    %v197 = vadd.f32 %v191, 1e-05
    %v198 = vadd.f32 %v192, 1e-05
    %v199 = vadd.f32 %v193, 1e-05
    %v200 = vadd.f32 %v194, 1e-05
    %v201 = vrsqrt.pop %v195
    %v202 = vmul.f32 %v201, %v195
    %v203 = vmul.f32 %v202, %v201
    %v204 = vmul.f32 0.5, %v203
    %v205 = vsub.f32 1.5, %v204
    %v206 = vmul.f32 %v201, %v205
    %vm207 = vweird.f32 %v195
    %vm208 = vweird.f32 %v201
    %vm209 = vmor %vm207, %vm208
    %v210 = vsel %vm209, %v201, %v206
    %v211 = vrsqrt.pop %v196
    %v212 = vmul.f32 %v211, %v196
    %v213 = vmul.f32 %v212, %v211
    %v214 = vmul.f32 0.5, %v213
    %v215 = vsub.f32 1.5, %v214
    %v216 = vmul.f32 %v211, %v215
    %vm217 = vweird.f32 %v196
    %vm218 = vweird.f32 %v211
    %vm219 = vmor %vm217, %vm218
    %v220 = vsel %vm219, %v211, %v216
    %v221 = vrsqrt.pop %v197
    %v222 = vmul.f32 %v221, %v197
    %v223 = vmul.f32 %v222, %v221
    %v224 = vmul.f32 0.5, %v223
    %v225 = vsub.f32 1.5, %v224
    %v226 = vmul.f32 %v221, %v225
    %vm227 = vweird.f32 %v197
    %vm228 = vweird.f32 %v221
    %vm229 = vmor %vm227, %vm228
    %v230 = vsel %vm229, %v221, %v226
    %v231 = vrsqrt.pop %v198
    %v232 = vmul.f32 %v231, %v198
    %v233 = vmul.f32 %v232, %v231
    %v234 = vmul.f32 0.5, %v233
    %v235 = vsub.f32 1.5, %v234
    %v236 = vmul.f32 %v231, %v235
    %vm237 = vweird.f32 %v198
    %vm238 = vweird.f32 %v231
    %vm239 = vmor %vm237, %vm238
    %v240 = vsel %vm239, %v231, %v236
    %v241 = vrsqrt.pop %v199
    %v242 = vmul.f32 %v241, %v199
    %v243 = vmul.f32 %v242, %v241
    %v244 = vmul.f32 0.5, %v243
    %v245 = vsub.f32 1.5, %v244
    %v246 = vmul.f32 %v241, %v245
    %vm247 = vweird.f32 %v199
    %vm248 = vweird.f32 %v241
    %vm249 = vmor %vm247, %vm248
    %v250 = vsel %vm249, %v241, %v246
    %v251 = vrsqrt.pop %v200
    %v252 = vmul.f32 %v251, %v200
    %v253 = vmul.f32 %v252, %v251
    %v254 = vmul.f32 0.5, %v253
    %v255 = vsub.f32 1.5, %v254
    %v256 = vmul.f32 %v251, %v255
    %vm257 = vweird.f32 %v200
    %vm258 = vweird.f32 %v251
    %vm259 = vmor %vm257, %vm258
    %v260 = vsel %vm259, %v251, %v256
    %v261 = vmul.f32 %v165, %v210
    %v262 = vmul.f32 %v166, %v220
    %v263 = vmul.f32 %v167, %v230
    %v264 = vmul.f32 %v168, %v240
    %v265 = vmul.f32 %v169, %v250
    %v266 = vmul.f32 %v170, %v260
    %v267 = vld [vmem:[#allocation5] sm:$0x1]
    %v269 = vperm.slane %v267, 0
    %v271 = vmul.f32 %v261, %v269
    %v272 = vmul.f32 %v262, %v269
    %v273 = vmul.f32 %v263, %v269
    %v274 = vmul.f32 %v264, %v269
    %v275 = vmul.f32 %v265, %v269
    %v276 = vmul.f32 %v266, %v269
    %v277 = vld [vmem:[%s2] sm:$0x1]
    %v279 = vperm.slane %v277, 0
    %v281 = vadd.f32 %v271, %v279
    %v282 = vadd.f32 %v272, %v279
    %v283 = vadd.f32 %v273, %v279
    %v284 = vadd.f32 %v274, %v279
    %v285 = vadd.f32 %v275, %v279
    %v286 = vadd.f32 %v276, %v279
    %v287 = vld [vmem:[#allocation7] sm:$0xff]
    %v288 = vld [vmem:[#allocation7 + $0x8] sm:$0xff]
    %v289 = vld [vmem:[#allocation7 + $0x10] sm:$0xff]
    %v290 = vld [vmem:[#allocation7 + $0x18] sm:$0xff]
    %v291 = vld [vmem:[#allocation7 + $0x20] sm:$0xff]
    %v292 = vld [vmem:[#allocation7 + $0x28] sm:$0xff]
    %v293 = vld [vmem:[#allocation7 + $0x30] sm:$0xff]
    %v294 = vld [vmem:[#allocation7 + $0x38] sm:$0xff]
    %v295 = vld [vmem:[#allocation7 + $0x40] sm:$0xff]
    %v296 = vld [vmem:[#allocation7 + $0x48] sm:$0xff]
    %v297 = vld [vmem:[#allocation7 + $0x50] sm:$0xff]
    %v298 = vld [vmem:[#allocation7 + $0x58] sm:$0xff]
    %v299 = vld [vmem:[#allocation7 + $0x60] sm:$0xff]
    %v300 = vld [vmem:[#allocation7 + $0x68] sm:$0xff]
    %v301 = vld [vmem:[#allocation7 + $0x70] sm:$0xff]
    %v302 = vld [vmem:[#allocation7 + $0x78] sm:$0xff]
    %v303 = vld [vmem:[%s4] sm:$0x1]
    %v305 = vperm.slane %v303, 0
    %307 = vmatpush.msra.mxu0 %v302
    %308 = vmatpush.msra.mxu0 %v301
    %309 = vmatpush.msra.mxu0 %v300
    %310 = vmatpush.msra.mxu0 %v299
    %311 = vmatpush.msra.mxu0 %v298
    %312 = vmatpush.msra.mxu0 %v297
    %313 = vmatpush.msra.mxu0 %v296
    %314 = vmatpush.msra.mxu0 %v295
    %315 = vmatpush.msra.mxu0 %v294
    %316 = vmatpush.msra.mxu0 %v293
    %317 = vmatpush.msra.mxu0 %v292
    %318 = vmatpush.msra.mxu0 %v291
    %319 = vmatpush.msra.mxu0 %v290
    %320 = vmatpush.msra.mxu0 %v289
    %321 = vmatpush.msra.mxu0 %v288
    %322 = vmatpush.msra.mxu0 %v287
    %323 = vmatmul.f32.gmra.mxu0 %v281
    %v324 = vpop.f32.mrf.mxu0
    %v325 = vadd.f32 %v305, %v324
    %326 = vmatmul.f32.gmra.mxu0 %v282
    %v327 = vpop.f32.mrf.mxu0
    %v328 = vadd.f32 %v305, %v327
    %329 = vmatmul.f32.gmra.mxu0 %v283
    %v330 = vpop.f32.mrf.mxu0
    %v331 = vadd.f32 %v305, %v330
    %332 = vmatmul.f32.gmra.mxu0 %v284
    %v333 = vpop.f32.mrf.mxu0
    %v334 = vadd.f32 %v305, %v333
    %335 = vmatmul.f32.gmra.mxu0 %v285
    %v336 = vpop.f32.mrf.mxu0
    %v337 = vadd.f32 %v305, %v336
    %338 = vmatmul.f32.gmra.mxu0 %v286
    %v339 = vpop.f32.mrf.mxu0
    %v340 = vadd.f32 %v305, %v339
    %341 = vdwg.mxu0
    %v342 = vld [vmem:[#allocation8] sm:$0xff]
    %v343 = vld [vmem:[#allocation8 + $0x8] sm:$0xff]
    %v344 = vld [vmem:[#allocation8 + $0x10] sm:$0xff]
    %v345 = vld [vmem:[#allocation8 + $0x18] sm:$0xff]
    %v346 = vld [vmem:[#allocation8 + $0x20] sm:$0xff]
    %v347 = vld [vmem:[#allocation8 + $0x28] sm:$0xff]
    %v348 = vld [vmem:[#allocation8 + $0x30] sm:$0xff]
    %v349 = vld [vmem:[#allocation8 + $0x38] sm:$0xff]
    %v350 = vld [vmem:[#allocation8 + $0x40] sm:$0xff]
    %v351 = vld [vmem:[#allocation8 + $0x48] sm:$0xff]
    %v352 = vld [vmem:[#allocation8 + $0x50] sm:$0xff]
    %v353 = vld [vmem:[#allocation8 + $0x58] sm:$0xff]
    %v354 = vld [vmem:[#allocation8 + $0x60] sm:$0xff]
    %v355 = vld [vmem:[#allocation8 + $0x68] sm:$0xff]
    %v356 = vld [vmem:[#allocation8 + $0x70] sm:$0xff]
    %v357 = vld [vmem:[#allocation8 + $0x78] sm:$0xff]
    %v358 = vld [vmem:[%s6] sm:$0x1]
    %v360 = vperm.slane %v358, 0
    %362 = vmatpush.msra.mxu0 %v357
    %363 = vmatpush.msra.mxu0 %v356
    %364 = vmatpush.msra.mxu0 %v355
    %365 = vmatpush.msra.mxu0 %v354
    %366 = vmatpush.msra.mxu0 %v353
    %367 = vmatpush.msra.mxu0 %v352
    %368 = vmatpush.msra.mxu0 %v351
    %369 = vmatpush.msra.mxu0 %v350
    %370 = vmatpush.msra.mxu0 %v349
    %371 = vmatpush.msra.mxu0 %v348
    %372 = vmatpush.msra.mxu0 %v347
    %373 = vmatpush.msra.mxu0 %v346
    %374 = vmatpush.msra.mxu0 %v345
    %375 = vmatpush.msra.mxu0 %v344
    %376 = vmatpush.msra.mxu0 %v343
    %377 = vmatpush.msra.mxu0 %v342
    %378 = vmatmul.f32.gmra.mxu0 %v281
    %v379 = vpop.f32.mrf.mxu0
    %v380 = vadd.f32 %v360, %v379
    %381 = vmatmul.f32.gmra.mxu0 %v282
    %v382 = vpop.f32.mrf.mxu0
    %v383 = vadd.f32 %v360, %v382
    %384 = vmatmul.f32.gmra.mxu0 %v283
    %v385 = vpop.f32.mrf.mxu0
    %v386 = vadd.f32 %v360, %v385
    %387 = vmatmul.f32.gmra.mxu0 %v284
    %v388 = vpop.f32.mrf.mxu0
    %v389 = vadd.f32 %v360, %v388
    %390 = vmatmul.f32.gmra.mxu0 %v285
    %v391 = vpop.f32.mrf.mxu0
    %v392 = vadd.f32 %v360, %v391
    %393 = vmatmul.f32.gmra.mxu0 %v286
    %v394 = vpop.f32.mrf.mxu0
    %v395 = vadd.f32 %v360, %v394
    %396 = vdwg.mxu0
    %v397 = vxor.u32 %v380, 2147483648
    %v398 = vxor.u32 %v383, 2147483648
    %v399 = vxor.u32 %v386, 2147483648
    %v400 = vxor.u32 %v389, 2147483648
    %v401 = vxor.u32 %v392, 2147483648
    %v402 = vxor.u32 %v395, 2147483648
    %v403 = vmul.f32 %v397, 1.442695
    %v404 = vpow.pop %v403
    %v405 = vmul.f32 %v398, 1.442695
    %v406 = vpow.pop %v405
    %v407 = vmul.f32 %v399, 1.442695
    %v408 = vpow.pop %v407
    %v409 = vmul.f32 %v400, 1.442695
    %v410 = vpow.pop %v409
    %v411 = vmul.f32 %v401, 1.442695
    %v412 = vpow.pop %v411
    %v413 = vmul.f32 %v402, 1.442695
    %v414 = vpow.pop %v413
    %v415 = vadd.f32 %v404, 1.0
    %v416 = vadd.f32 %v406, 1.0
    %v417 = vadd.f32 %v408, 1.0
    %v418 = vadd.f32 %v410, 1.0
    %v419 = vadd.f32 %v412, 1.0
    %v420 = vadd.f32 %v414, 1.0
    %v421 = vrcp.pop %v415
    %v422 = vmul.f32 %v415, %v421
    %v423 = vsub.f32 1.0, %v422
    %v424 = vmul.f32 %v421, %v423
    %v425 = vadd.f32 %v421, %v424
    %vm426 = vweird.f32 %v415
    %vm427 = vweird.f32 %v421
    %vm428 = vmor %vm426, %vm427
    %v429 = vsel %vm428, %v421, %v425
    %v430 = vand.u32 2147483647, %v415
    %vm431 = vcmp.eq.f32.partialorder %v430, 8.507059e+37
    %v432 = vand.u32 %v415, 2147483648
    %v433 = vor.u32 1.1754944e-38, %v432
    %v434 = vsel %vm431, %v433, %v429
    %v435 = vmul.f32 1.0, %v434
    %v436 = vrcp.pop %v416
    %v437 = vmul.f32 %v416, %v436
    %v438 = vsub.f32 1.0, %v437
    %v439 = vmul.f32 %v436, %v438
    %v440 = vadd.f32 %v436, %v439
    %vm441 = vweird.f32 %v416
    %vm442 = vweird.f32 %v436
    %vm443 = vmor %vm441, %vm442
    %v444 = vsel %vm443, %v436, %v440
    %v445 = vand.u32 2147483647, %v416
    %vm446 = vcmp.eq.f32.partialorder %v445, 8.507059e+37
    %v447 = vand.u32 %v416, 2147483648
    %v448 = vor.u32 1.1754944e-38, %v447
    %v449 = vsel %vm446, %v448, %v444
    %v450 = vmul.f32 1.0, %v449
    %v451 = vrcp.pop %v417
    %v452 = vmul.f32 %v417, %v451
    %v453 = vsub.f32 1.0, %v452
    %v454 = vmul.f32 %v451, %v453
    %v455 = vadd.f32 %v451, %v454
    %vm456 = vweird.f32 %v417
    %vm457 = vweird.f32 %v451
    %vm458 = vmor %vm456, %vm457
    %v459 = vsel %vm458, %v451, %v455
    %v460 = vand.u32 2147483647, %v417
    %vm461 = vcmp.eq.f32.partialorder %v460, 8.507059e+37
    %v462 = vand.u32 %v417, 2147483648
    %v463 = vor.u32 1.1754944e-38, %v462
    %v464 = vsel %vm461, %v463, %v459
    %v465 = vmul.f32 1.0, %v464
    %v466 = vrcp.pop %v418
    %v467 = vmul.f32 %v418, %v466
    %v468 = vsub.f32 1.0, %v467
    %v469 = vmul.f32 %v466, %v468
    %v470 = vadd.f32 %v466, %v469
    %vm471 = vweird.f32 %v418
    %vm472 = vweird.f32 %v466
    %vm473 = vmor %vm471, %vm472
    %v474 = vsel %vm473, %v466, %v470
    %v475 = vand.u32 2147483647, %v418
    %vm476 = vcmp.eq.f32.partialorder %v475, 8.507059e+37
    %v477 = vand.u32 %v418, 2147483648
    %v478 = vor.u32 1.1754944e-38, %v477
    %v479 = vsel %vm476, %v478, %v474
    %v480 = vmul.f32 1.0, %v479
    %v481 = vrcp.pop %v419
    %v482 = vmul.f32 %v419, %v481
    %v483 = vsub.f32 1.0, %v482
    %v484 = vmul.f32 %v481, %v483
    %v485 = vadd.f32 %v481, %v484
    %vm486 = vweird.f32 %v419
    %vm487 = vweird.f32 %v481
    %vm488 = vmor %vm486, %vm487
    %v489 = vsel %vm488, %v481, %v485
    %v490 = vand.u32 2147483647, %v419
    %vm491 = vcmp.eq.f32.partialorder %v490, 8.507059e+37
    %v492 = vand.u32 %v419, 2147483648
    %v493 = vor.u32 1.1754944e-38, %v492
    %v494 = vsel %vm491, %v493, %v489
    %v495 = vmul.f32 1.0, %v494
    %v496 = vrcp.pop %v420
    %v497 = vmul.f32 %v420, %v496
    %v498 = vsub.f32 1.0, %v497
    %v499 = vmul.f32 %v496, %v498
    %v500 = vadd.f32 %v496, %v499
    %vm501 = vweird.f32 %v420
    %vm502 = vweird.f32 %v496
    %vm503 = vmor %vm501, %vm502
    %v504 = vsel %vm503, %v496, %v500
    %v505 = vand.u32 2147483647, %v420
    %vm506 = vcmp.eq.f32.partialorder %v505, 8.507059e+37
    %v507 = vand.u32 %v420, 2147483648
    %v508 = vor.u32 1.1754944e-38, %v507
    %v509 = vsel %vm506, %v508, %v504
    %v510 = vmul.f32 1.0, %v509
    %v511 = vmul.f32 %v325, %v435
    %v512 = vmul.f32 %v328, %v450
    %v513 = vmul.f32 %v331, %v465
    %v514 = vmul.f32 %v334, %v480
    %v515 = vmul.f32 %v337, %v495
    %v516 = vmul.f32 %v340, %v510
    %v517 = vlaneseq
    %v518 = vshrl.u32 %v517, 7
    %v519 = vadd.s32 %v518, 8
    %v520 = vadd.s32 %v518, 16
    %v521 = vadd.s32 %v518, 24
    %v522 = vadd.s32 %v518, 32
    %v523 = vadd.s32 %v518, 40
    %vm524 = vcmp.lt.s32.totalorder %v518, 0
    %v525 = vsub.s32 0, %v518
    %v526 = vsel %vm524, %v525, %v518
    %v527 = vand.u32 %v526, 65535
    %v528 = vshrl.u32 %v526, 16
    %v530 = vmul.u32 %v527, 43691
    %v531 = vmul.u32 %v527, 43690
    %v532 = vmul.u32 %v528, 43691
    %v533 = vmul.u32 %v528, 43690
    %v534 = vshll.u32 %v531, 16
    %v535 = vshrl.u32 %v531, 16
    %v536 = vshll.u32 %v532, 16
    %v537 = vshrl.u32 %v532, 16
    %vm538 = vc.u32 %v530, %v534
    %v539 = vsel %vm538, 1, 0
    %v540 = vadd.s32 %v530, %v534
    %v541 = vadd.s32 %v533, %v539
    %vm542 = vc.u32 %v540, %v536
    %v543 = vsel %vm542, 1, 0
    %v544 = vadd.s32 %v540, %v536
    %v545 = vadd.s32 %v541, %v543
    %v546 = vadd.s32 %v545, %v535
    %v547 = vadd.s32 %v546, %v537
    %v548 = vshrl.u32 %v547, 4
    %v549 = vmul.u32 %v548, 24
    %v550 = vsub.s32 %v526, %v549
    %v551 = vsub.s32 0, %v550
    %v552 = vsel %vm524, %v551, %v550
    %vm553 = vcmp.lt.s32.totalorder %v519, 0
    %v554 = vsub.s32 0, %v519
    %v555 = vsel %vm553, %v554, %v519
    %v556 = vand.u32 %v555, 65535
    %v557 = vshrl.u32 %v555, 16
    %v559 = vmul.u32 %v556, 43691
    %v560 = vmul.u32 %v556, 43690
    %v561 = vmul.u32 %v557, 43691
    %v562 = vmul.u32 %v557, 43690
    %v563 = vshll.u32 %v560, 16
    %v564 = vshrl.u32 %v560, 16
    %v565 = vshll.u32 %v561, 16
    %v566 = vshrl.u32 %v561, 16
    %vm567 = vc.u32 %v559, %v563
    %v568 = vsel %vm567, 1, 0
    %v569 = vadd.s32 %v559, %v563
    %v570 = vadd.s32 %v562, %v568
    %vm571 = vc.u32 %v569, %v565
    %v572 = vsel %vm571, 1, 0
    %v573 = vadd.s32 %v569, %v565
    %v574 = vadd.s32 %v570, %v572
    %v575 = vadd.s32 %v574, %v564
    %v576 = vadd.s32 %v575, %v566
    %v577 = vshrl.u32 %v576, 4
    %v578 = vmul.u32 %v577, 24
    %v579 = vsub.s32 %v555, %v578
    %v580 = vsub.s32 0, %v579
    %v581 = vsel %vm553, %v580, %v579
    %vm582 = vcmp.lt.s32.totalorder %v520, 0
    %v583 = vsub.s32 0, %v520
    %v584 = vsel %vm582, %v583, %v520
    %v585 = vand.u32 %v584, 65535
    %v586 = vshrl.u32 %v584, 16
    %v588 = vmul.u32 %v585, 43691
    %v589 = vmul.u32 %v585, 43690
    %v590 = vmul.u32 %v586, 43691
    %v591 = vmul.u32 %v586, 43690
    %v592 = vshll.u32 %v589, 16
    %v593 = vshrl.u32 %v589, 16
    %v594 = vshll.u32 %v590, 16
    %v595 = vshrl.u32 %v590, 16
    %vm596 = vc.u32 %v588, %v592
    %v597 = vsel %vm596, 1, 0
    %v598 = vadd.s32 %v588, %v592
    %v599 = vadd.s32 %v591, %v597
    %vm600 = vc.u32 %v598, %v594
    %v601 = vsel %vm600, 1, 0
    %v602 = vadd.s32 %v598, %v594
    %v603 = vadd.s32 %v599, %v601
    %v604 = vadd.s32 %v603, %v593
    %v605 = vadd.s32 %v604, %v595
    %v606 = vshrl.u32 %v605, 4
    %v607 = vmul.u32 %v606, 24
    %v608 = vsub.s32 %v584, %v607
    %v609 = vsub.s32 0, %v608
    %v610 = vsel %vm582, %v609, %v608
    %vm611 = vcmp.lt.s32.totalorder %v521, 0
    %v612 = vsub.s32 0, %v521
    %v613 = vsel %vm611, %v612, %v521
    %v614 = vand.u32 %v613, 65535
    %v615 = vshrl.u32 %v613, 16
    %v617 = vmul.u32 %v614, 43691
    %v618 = vmul.u32 %v614, 43690
    %v619 = vmul.u32 %v615, 43691
    %v620 = vmul.u32 %v615, 43690
    %v621 = vshll.u32 %v618, 16
    %v622 = vshrl.u32 %v618, 16
    %v623 = vshll.u32 %v619, 16
    %v624 = vshrl.u32 %v619, 16
    %vm625 = vc.u32 %v617, %v621
    %v626 = vsel %vm625, 1, 0
    %v627 = vadd.s32 %v617, %v621
    %v628 = vadd.s32 %v620, %v626
    %vm629 = vc.u32 %v627, %v623
    %v630 = vsel %vm629, 1, 0
    %v631 = vadd.s32 %v627, %v623
    %v632 = vadd.s32 %v628, %v630
    %v633 = vadd.s32 %v632, %v622
    %v634 = vadd.s32 %v633, %v624
    %v635 = vshrl.u32 %v634, 4
    %v636 = vmul.u32 %v635, 24
    %v637 = vsub.s32 %v613, %v636
    %v638 = vsub.s32 0, %v637
    %v639 = vsel %vm611, %v638, %v637
    %vm640 = vcmp.lt.s32.totalorder %v522, 0
    %v641 = vsub.s32 0, %v522
    %v642 = vsel %vm640, %v641, %v522
    %v643 = vand.u32 %v642, 65535
    %v644 = vshrl.u32 %v642, 16
    %v646 = vmul.u32 %v643, 43691
    %v647 = vmul.u32 %v643, 43690
    %v648 = vmul.u32 %v644, 43691
    %v649 = vmul.u32 %v644, 43690
    %v650 = vshll.u32 %v647, 16
    %v651 = vshrl.u32 %v647, 16
    %v652 = vshll.u32 %v648, 16
    %v653 = vshrl.u32 %v648, 16
    %vm654 = vc.u32 %v646, %v650
    %v655 = vsel %vm654, 1, 0
    %v656 = vadd.s32 %v646, %v650
    %v657 = vadd.s32 %v649, %v655
    %vm658 = vc.u32 %v656, %v652
    %v659 = vsel %vm658, 1, 0
    %v660 = vadd.s32 %v656, %v652
    %v661 = vadd.s32 %v657, %v659
    %v662 = vadd.s32 %v661, %v651
    %v663 = vadd.s32 %v662, %v653
    %v664 = vshrl.u32 %v663, 4
    %v665 = vmul.u32 %v664, 24
    %v666 = vsub.s32 %v642, %v665
    %v667 = vsub.s32 0, %v666
    %v668 = vsel %vm640, %v667, %v666
    %vm669 = vcmp.lt.s32.totalorder %v523, 0
    %v670 = vsub.s32 0, %v523
    %v671 = vsel %vm669, %v670, %v523
    %v672 = vand.u32 %v671, 65535
    %v673 = vshrl.u32 %v671, 16
    %v675 = vmul.u32 %v672, 43691
    %v676 = vmul.u32 %v672, 43690
    %v677 = vmul.u32 %v673, 43691
    %v678 = vmul.u32 %v673, 43690
    %v679 = vshll.u32 %v676, 16
    %v680 = vshrl.u32 %v676, 16
    %v681 = vshll.u32 %v677, 16
    %v682 = vshrl.u32 %v677, 16
    %vm683 = vc.u32 %v675, %v679
    %v684 = vsel %vm683, 1, 0
    %v685 = vadd.s32 %v675, %v679
    %v686 = vadd.s32 %v678, %v684
    %vm687 = vc.u32 %v685, %v681
    %v688 = vsel %vm687, 1, 0
    %v689 = vadd.s32 %v685, %v681
    %v690 = vadd.s32 %v686, %v688
    %v691 = vadd.s32 %v690, %v680
    %v692 = vadd.s32 %v691, %v682
    %v693 = vshrl.u32 %v692, 4
    %v694 = vmul.u32 %v693, 24
    %v695 = vsub.s32 %v671, %v694
    %v696 = vsub.s32 0, %v695
    %v697 = vsel %vm669, %v696, %v695
    %vm698 = vcmp.ge.s32.totalorder %v552, 3
    %vm699 = vcmp.ge.s32.totalorder %v581, 3
    %vm700 = vcmp.ge.s32.totalorder %v610, 3
    %vm701 = vcmp.ge.s32.totalorder %v639, 3
    %vm702 = vcmp.ge.s32.totalorder %v668, 3
    %vm703 = vcmp.ge.s32.totalorder %v697, 3
    %vm704 = vcmp.lt.s32.totalorder %v552, 19
    %vm705 = vcmp.lt.s32.totalorder %v581, 19
    %vm706 = vcmp.lt.s32.totalorder %v610, 19
    %vm707 = vcmp.lt.s32.totalorder %v639, 19
    %vm708 = vcmp.lt.s32.totalorder %v668, 19
    %vm709 = vcmp.lt.s32.totalorder %v697, 19
    %vm710 = vmand %vm698, %vm704
    %vm711 = vmand %vm699, %vm705
    %vm712 = vmand %vm700, %vm706
    %vm713 = vmand %vm701, %vm707
    %vm714 = vmand %vm702, %vm708
    %vm715 = vmand %vm703, %vm709
    %v716 = vsel %vm710, %v511, 0.0
    %v717 = vsel %vm711, %v512, 0.0
    %v718 = vsel %vm712, %v513, 0.0
    %v719 = vsel %vm713, %v514, 0.0
    %v720 = vsel %vm714, %v515, 0.0
    %v721 = vsel %vm715, %v516, 0.0
    %v722 = vld [vmem:[#allocation10] sm:$0x7f]
    %v723 = vperm.slane %v722, 0
    %v724 = vmul.f32 %v716, %v723
    %v725 = vmul.f32 %v717, %v723
    %v726 = vmul.f32 %v718, %v723
    %v727 = vmul.f32 %v719, %v723
    %v728 = vmul.f32 %v720, %v723
    %v729 = vmul.f32 %v721, %v723
    %v730 = vrot.slane %v716, 1
    %v731 = vrot.slane %v717, 1
    %v732 = vrot.slane %v718, 1
    %v733 = vrot.slane %v719, 1
    %v734 = vrot.slane %v720, 1
    %v735 = vrot.slane %v721, 1
    %vm736 = vcmp.lt.s32.totalorder %v518, 7
    %v737 = vsel %vm736, %v734, %v735
    %v738 = vsel %vm736, %v733, %v734
    %v739 = vsel %vm736, %v732, %v733
    %v740 = vsel %vm736, %v731, %v732
    %v741 = vsel %vm736, %v730, %v731
    %v742 = vsel %vm736, %v735, %v730
    %v743 = vperm.slane %v722, 1
    %v744 = vmul.f32 %v741, %v743
    %v745 = vmul.f32 %v740, %v743
    %v746 = vmul.f32 %v739, %v743
    %v747 = vmul.f32 %v738, %v743
    %v748 = vmul.f32 %v737, %v743
    %v749 = vmul.f32 %v742, %v743
    %v750 = vadd.f32 %v724, %v744
    %v751 = vadd.f32 %v725, %v745
    %v752 = vadd.f32 %v726, %v746
    %v753 = vadd.f32 %v727, %v747
    %v754 = vadd.f32 %v728, %v748
    %v755 = vadd.f32 %v729, %v749
    %v756 = vrot.slane %v716, 2
    %v757 = vrot.slane %v717, 2
    %v758 = vrot.slane %v718, 2
    %v759 = vrot.slane %v719, 2
    %v760 = vrot.slane %v720, 2
    %v761 = vrot.slane %v721, 2
    %vm762 = vcmp.lt.s32.totalorder %v518, 6
    %v763 = vsel %vm762, %v760, %v761
    %v764 = vsel %vm762, %v759, %v760
    %v765 = vsel %vm762, %v758, %v759
    %v766 = vsel %vm762, %v757, %v758
    %v767 = vsel %vm762, %v756, %v757
    %v768 = vsel %vm762, %v761, %v756
    %v769 = vperm.slane %v722, 2
    %v770 = vmul.f32 %v767, %v769
    %v771 = vmul.f32 %v766, %v769
    %v772 = vmul.f32 %v765, %v769
    %v773 = vmul.f32 %v764, %v769
    %v774 = vmul.f32 %v763, %v769
    %v775 = vmul.f32 %v768, %v769
    %v776 = vadd.f32 %v750, %v770
    %v777 = vadd.f32 %v751, %v771
    %v778 = vadd.f32 %v752, %v772
    %v779 = vadd.f32 %v753, %v773
    %v780 = vadd.f32 %v754, %v774
    %v781 = vadd.f32 %v755, %v775
    %v782 = vrot.slane %v716, 3
    %v783 = vrot.slane %v717, 3
    %v784 = vrot.slane %v718, 3
    %v785 = vrot.slane %v719, 3
    %v786 = vrot.slane %v720, 3
    %v787 = vrot.slane %v721, 3
    %vm788 = vcmp.lt.s32.totalorder %v518, 5
    %v789 = vsel %vm788, %v786, %v787
    %v790 = vsel %vm788, %v785, %v786
    %v791 = vsel %vm788, %v784, %v785
    %v792 = vsel %vm788, %v783, %v784
    %v793 = vsel %vm788, %v782, %v783
    %v794 = vsel %vm788, %v787, %v782
    %v795 = vperm.slane %v722, 3
    %v796 = vmul.f32 %v793, %v795
    %v797 = vmul.f32 %v792, %v795
    %v798 = vmul.f32 %v791, %v795
    %v799 = vmul.f32 %v790, %v795
    %v800 = vmul.f32 %v789, %v795
    %v801 = vmul.f32 %v794, %v795
    %v802 = vadd.f32 %v776, %v796
    %v803 = vadd.f32 %v777, %v797
    %v804 = vadd.f32 %v778, %v798
    %v805 = vadd.f32 %v779, %v799
    %v806 = vadd.f32 %v780, %v800
    %v807 = vadd.f32 %v781, %v801
    %v808 = vrot.slane %v716, 4
    %v809 = vrot.slane %v717, 4
    %v810 = vrot.slane %v718, 4
    %v811 = vrot.slane %v719, 4
    %v812 = vrot.slane %v720, 4
    %v813 = vrot.slane %v721, 4
    %vm814 = vcmp.lt.s32.totalorder %v518, 4
    %v815 = vsel %vm814, %v812, %v813
    %v816 = vsel %vm814, %v811, %v812
    %v817 = vsel %vm814, %v810, %v811
    %v818 = vsel %vm814, %v809, %v810
    %v819 = vsel %vm814, %v808, %v809
    %v820 = vsel %vm814, %v813, %v808
    %v821 = vperm.slane %v722, 4
    %v822 = vmul.f32 %v819, %v821
    %v823 = vmul.f32 %v818, %v821
    %v824 = vmul.f32 %v817, %v821
    %v825 = vmul.f32 %v816, %v821
    %v826 = vmul.f32 %v815, %v821
    %v827 = vmul.f32 %v820, %v821
    %v828 = vadd.f32 %v802, %v822
    %v829 = vadd.f32 %v803, %v823
    %v830 = vadd.f32 %v804, %v824
    %v831 = vadd.f32 %v805, %v825
    %v832 = vadd.f32 %v806, %v826
    %v833 = vadd.f32 %v807, %v827
    %v834 = vrot.slane %v716, 5
    %v835 = vrot.slane %v717, 5
    %v836 = vrot.slane %v718, 5
    %v837 = vrot.slane %v719, 5
    %v838 = vrot.slane %v720, 5
    %v839 = vrot.slane %v721, 5
    %vm840 = vcmp.lt.s32.totalorder %v518, 3
    %v841 = vsel %vm840, %v838, %v839
    %v842 = vsel %vm840, %v837, %v838
    %v843 = vsel %vm840, %v836, %v837
    %v844 = vsel %vm840, %v835, %v836
    %v845 = vsel %vm840, %v834, %v835
    %v846 = vsel %vm840, %v839, %v834
    %v847 = vperm.slane %v722, 5
    %v848 = vmul.f32 %v845, %v847
    %v849 = vmul.f32 %v844, %v847
    %v850 = vmul.f32 %v843, %v847
    %v851 = vmul.f32 %v842, %v847
    %v852 = vmul.f32 %v841, %v847
    %v853 = vmul.f32 %v846, %v847
    %v854 = vadd.f32 %v828, %v848
    %v855 = vadd.f32 %v829, %v849
    %v856 = vadd.f32 %v830, %v850
    %v857 = vadd.f32 %v831, %v851
    %v858 = vadd.f32 %v832, %v852
    %v859 = vadd.f32 %v833, %v853
    %v860 = vrot.slane %v716, 6
    %v861 = vrot.slane %v717, 6
    %v862 = vrot.slane %v718, 6
    %v863 = vrot.slane %v719, 6
    %v864 = vrot.slane %v720, 6
    %v865 = vrot.slane %v721, 6
    %vm866 = vcmp.lt.s32.totalorder %v518, 2
    %v867 = vsel %vm866, %v864, %v865
    %v868 = vsel %vm866, %v863, %v864
    %v869 = vsel %vm866, %v862, %v863
    %v870 = vsel %vm866, %v861, %v862
    %v871 = vsel %vm866, %v860, %v861
    %v872 = vsel %vm866, %v865, %v860
    %v873 = vperm.slane %v722, 6
    %v874 = vmul.f32 %v871, %v873
    %v875 = vmul.f32 %v870, %v873
    %v876 = vmul.f32 %v869, %v873
    %v877 = vmul.f32 %v868, %v873
    %v878 = vmul.f32 %v867, %v873
    %v879 = vmul.f32 %v872, %v873
    %v880 = vadd.f32 %v854, %v874
    %v881 = vadd.f32 %v855, %v875
    %v882 = vadd.f32 %v856, %v876
    %v883 = vadd.f32 %v857, %v877
    %v884 = vadd.f32 %v858, %v878
    %v885 = vadd.f32 %v859, %v879
    %v886 = vld [vmem:[%s8] sm:$0x1]
    %v888 = vperm.slane %v886, 0
    %v890 = vmul.f32 %v880, %v888
    %v891 = vmul.f32 %v881, %v888
    %v892 = vmul.f32 %v882, %v888
    %v893 = vmul.f32 %v883, %v888
    %v894 = vmul.f32 %v884, %v888
    %v895 = vmul.f32 %v885, %v888
    %v896 = vld [vmem:[%s9] sm:$0x1]
    %v898 = vperm.slane %v896, 0
    %v900 = vadd.f32 %v890, %v898
    %v901 = vadd.f32 %v891, %v898
    %v902 = vadd.f32 %v892, %v898
    %v903 = vadd.f32 %v893, %v898
    %v904 = vadd.f32 %v894, %v898
    %v905 = vadd.f32 %v895, %v898
    %v906 = vxor.u32 %v900, 2147483648
    %v907 = vxor.u32 %v901, 2147483648
    %v908 = vxor.u32 %v902, 2147483648
    %v909 = vxor.u32 %v903, 2147483648
    %v910 = vxor.u32 %v904, 2147483648
    %v911 = vxor.u32 %v905, 2147483648
    %v912 = vmul.f32 %v906, 1.442695
    %v913 = vpow.pop %v912
    %v914 = vmul.f32 %v907, 1.442695
    %v915 = vpow.pop %v914
    %v916 = vmul.f32 %v908, 1.442695
    %v917 = vpow.pop %v916
    %v918 = vmul.f32 %v909, 1.442695
    %v919 = vpow.pop %v918
    %v920 = vmul.f32 %v910, 1.442695
    %v921 = vpow.pop %v920
    %v922 = vmul.f32 %v911, 1.442695
    %v923 = vpow.pop %v922
    %v924 = vadd.f32 %v913, 1.0
    %v925 = vadd.f32 %v915, 1.0
    %v926 = vadd.f32 %v917, 1.0
    %v927 = vadd.f32 %v919, 1.0
    %v928 = vadd.f32 %v921, 1.0
    %v929 = vadd.f32 %v923, 1.0
    %v930 = vrcp.pop %v924
    %v931 = vmul.f32 %v924, %v930
    %v932 = vsub.f32 1.0, %v931
    %v933 = vmul.f32 %v930, %v932
    %v934 = vadd.f32 %v930, %v933
    %vm935 = vweird.f32 %v924
    %vm936 = vweird.f32 %v930
    %vm937 = vmor %vm935, %vm936
    %v938 = vsel %vm937, %v930, %v934
    %v939 = vand.u32 2147483647, %v924
    %vm940 = vcmp.eq.f32.partialorder %v939, 8.507059e+37
    %v941 = vand.u32 %v924, 2147483648
    %v942 = vor.u32 1.1754944e-38, %v941
    %v943 = vsel %vm940, %v942, %v938
    %v944 = vmul.f32 1.0, %v943
    %v945 = vrcp.pop %v925
    %v946 = vmul.f32 %v925, %v945
    %v947 = vsub.f32 1.0, %v946
    %v948 = vmul.f32 %v945, %v947
    %v949 = vadd.f32 %v945, %v948
    %vm950 = vweird.f32 %v925
    %vm951 = vweird.f32 %v945
    %vm952 = vmor %vm950, %vm951
    %v953 = vsel %vm952, %v945, %v949
    %v954 = vand.u32 2147483647, %v925
    %vm955 = vcmp.eq.f32.partialorder %v954, 8.507059e+37
    %v956 = vand.u32 %v925, 2147483648
    %v957 = vor.u32 1.1754944e-38, %v956
    %v958 = vsel %vm955, %v957, %v953
    %v959 = vmul.f32 1.0, %v958
    %v960 = vrcp.pop %v926
    %v961 = vmul.f32 %v926, %v960
    %v962 = vsub.f32 1.0, %v961
    %v963 = vmul.f32 %v960, %v962
    %v964 = vadd.f32 %v960, %v963
    %vm965 = vweird.f32 %v926
    %vm966 = vweird.f32 %v960
    %vm967 = vmor %vm965, %vm966
    %v968 = vsel %vm967, %v960, %v964
    %v969 = vand.u32 2147483647, %v926
    %vm970 = vcmp.eq.f32.partialorder %v969, 8.507059e+37
    %v971 = vand.u32 %v926, 2147483648
    %v972 = vor.u32 1.1754944e-38, %v971
    %v973 = vsel %vm970, %v972, %v968
    %v974 = vmul.f32 1.0, %v973
    %v975 = vrcp.pop %v927
    %v976 = vmul.f32 %v927, %v975
    %v977 = vsub.f32 1.0, %v976
    %v978 = vmul.f32 %v975, %v977
    %v979 = vadd.f32 %v975, %v978
    %vm980 = vweird.f32 %v927
    %vm981 = vweird.f32 %v975
    %vm982 = vmor %vm980, %vm981
    %v983 = vsel %vm982, %v975, %v979
    %v984 = vand.u32 2147483647, %v927
    %vm985 = vcmp.eq.f32.partialorder %v984, 8.507059e+37
    %v986 = vand.u32 %v927, 2147483648
    %v987 = vor.u32 1.1754944e-38, %v986
    %v988 = vsel %vm985, %v987, %v983
    %v989 = vmul.f32 1.0, %v988
    %v990 = vrcp.pop %v928
    %v991 = vmul.f32 %v928, %v990
    %v992 = vsub.f32 1.0, %v991
    %v993 = vmul.f32 %v990, %v992
    %v994 = vadd.f32 %v990, %v993
    %vm995 = vweird.f32 %v928
    %vm996 = vweird.f32 %v990
    %vm997 = vmor %vm995, %vm996
    %v998 = vsel %vm997, %v990, %v994
    %v999 = vand.u32 2147483647, %v928
    %vm1000 = vcmp.eq.f32.partialorder %v999, 8.507059e+37
    %v1001 = vand.u32 %v928, 2147483648
    %v1002 = vor.u32 1.1754944e-38, %v1001
    %v1003 = vsel %vm1000, %v1002, %v998
    %v1004 = vmul.f32 1.0, %v1003
    %v1005 = vrcp.pop %v929
    %v1006 = vmul.f32 %v929, %v1005
    %v1007 = vsub.f32 1.0, %v1006
    %v1008 = vmul.f32 %v1005, %v1007
    %v1009 = vadd.f32 %v1005, %v1008
    %vm1010 = vweird.f32 %v929
    %vm1011 = vweird.f32 %v1005
    %vm1012 = vmor %vm1010, %vm1011
    %v1013 = vsel %vm1012, %v1005, %v1009
    %v1014 = vand.u32 2147483647, %v929
    %vm1015 = vcmp.eq.f32.partialorder %v1014, 8.507059e+37
    %v1016 = vand.u32 %v929, 2147483648
    %v1017 = vor.u32 1.1754944e-38, %v1016
    %v1018 = vsel %vm1015, %v1017, %v1013
    %v1019 = vmul.f32 1.0, %v1018
    %v1020 = vmul.f32 %v900, %v944
    %v1021 = vmul.f32 %v901, %v959
    %v1022 = vmul.f32 %v902, %v974
    %v1023 = vmul.f32 %v903, %v989
    %v1024 = vmul.f32 %v904, %v1004
    %v1025 = vmul.f32 %v905, %v1019
    %v1026 = vld [vmem:[#allocation11] sm:$0xff]
    %v1027 = vld [vmem:[#allocation11 + $0x8] sm:$0xff]
    %v1028 = vld [vmem:[#allocation11 + $0x10] sm:$0xff]
    %v1029 = vld [vmem:[#allocation11 + $0x18] sm:$0xff]
    %v1030 = vld [vmem:[#allocation11 + $0x20] sm:$0xff]
    %v1031 = vld [vmem:[#allocation11 + $0x28] sm:$0xff]
    %v1032 = vld [vmem:[#allocation11 + $0x30] sm:$0xff]
    %v1033 = vld [vmem:[#allocation11 + $0x38] sm:$0xff]
    %v1034 = vld [vmem:[#allocation11 + $0x40] sm:$0xff]
    %v1035 = vld [vmem:[#allocation11 + $0x48] sm:$0xff]
    %v1036 = vld [vmem:[#allocation11 + $0x50] sm:$0xff]
    %v1037 = vld [vmem:[#allocation11 + $0x58] sm:$0xff]
    %v1038 = vld [vmem:[#allocation11 + $0x60] sm:$0xff]
    %v1039 = vld [vmem:[#allocation11 + $0x68] sm:$0xff]
    %v1040 = vld [vmem:[#allocation11 + $0x70] sm:$0xff]
    %v1041 = vld [vmem:[#allocation11 + $0x78] sm:$0xff]
    %v1042 = vld [vmem:[%s11] sm:$0x1]
    %v1044 = vperm.slane %v1042, 0
    %1046 = vmatpush.msra.mxu0 %v1041
    %1047 = vmatpush.msra.mxu0 %v1040
    %1048 = vmatpush.msra.mxu0 %v1039
    %1049 = vmatpush.msra.mxu0 %v1038
    %1050 = vmatpush.msra.mxu0 %v1037
    %1051 = vmatpush.msra.mxu0 %v1036
    %1052 = vmatpush.msra.mxu0 %v1035
    %1053 = vmatpush.msra.mxu0 %v1034
    %1054 = vmatpush.msra.mxu0 %v1033
    %1055 = vmatpush.msra.mxu0 %v1032
    %1056 = vmatpush.msra.mxu0 %v1031
    %1057 = vmatpush.msra.mxu0 %v1030
    %1058 = vmatpush.msra.mxu0 %v1029
    %1059 = vmatpush.msra.mxu0 %v1028
    %1060 = vmatpush.msra.mxu0 %v1027
    %1061 = vmatpush.msra.mxu0 %v1026
    %1062 = vmatmul.f32.gmra.mxu0 %v1020
    %v1063 = vpop.f32.mrf.mxu0
    %v1064 = vadd.f32 %v1044, %v1063
    %1065 = vmatmul.f32.gmra.mxu0 %v1021
    %v1066 = vpop.f32.mrf.mxu0
    %v1067 = vadd.f32 %v1044, %v1066
    %1068 = vmatmul.f32.gmra.mxu0 %v1022
    %v1069 = vpop.f32.mrf.mxu0
    %v1070 = vadd.f32 %v1044, %v1069
    %1071 = vmatmul.f32.gmra.mxu0 %v1023
    %v1072 = vpop.f32.mrf.mxu0
    %v1073 = vadd.f32 %v1044, %v1072
    %1074 = vmatmul.f32.gmra.mxu0 %v1024
    %v1075 = vpop.f32.mrf.mxu0
    %v1076 = vadd.f32 %v1044, %v1075
    %1077 = vmatmul.f32.gmra.mxu0 %v1025
    %v1078 = vpop.f32.mrf.mxu0
    %v1079 = vadd.f32 %v1044, %v1078
    %1080 = vdwg.mxu0
    %1081 = vst [vmem:[#allocation13] sm:$0xff] %v1064
    %1082 = vst [vmem:[#allocation13 + $0x8] sm:$0xff] %v1067
    %1083 = vst [vmem:[#allocation13 + $0x10] sm:$0xff] %v1070
    %1084 = vst [vmem:[#allocation13 + $0x18] sm:$0xff] %v1073
    %1085 = vst [vmem:[#allocation13 + $0x20] sm:$0xff] %v1076
    %1086 = vst [vmem:[#allocation13 + $0x28] sm:$0xff] %v1079
    // Predicated region
    $region74: #{tpu_custom_call.1} parent=1 // pred_check
      _
    $region75: #{tpu_custom_call.1} parent=1 // pred_check_branch
      %1088 = sbr.rel (0) target = $region77
    $region76: #{tpu_custom_call.1} parent=1 // pred_region
      %1090 = vsyncadd [#allocation4], 0
      %s1091 = sshll.u32 [#allocation13], 4
      %s1092 = int_to_ptr.vmem [resolvable:$true] %s1091
      %s1093 = sshll.u32 %s12, 4
      %s1094 = int_to_ptr.hbm [resolvable:$true] %s1093
      %1099 = dma.vmem_to_hbm [thread:$0]  %s1092, 768, %s1094, [#allocation4], 128, 128, 8
    $region77: #{tpu_custom_call.1} parent=1 // pred_fallthru
      _
    // Predicated region
    $region78: #{tpu_custom_call.1} parent=1 // pred_check
      _
    $region79: #{tpu_custom_call.1} parent=1 // pred_check_branch
      %1101 = sbr.rel (0) target = $region81
    $region80: #{tpu_custom_call.1} parent=1 // pred_region
      %1103 = dma.done [#allocation4], 768
    $region81: #{tpu_custom_call.1} parent=1 // pred_fallthru
      _
    %1104 = vsyncpa [#allocation3], 1
    %1105 = vsyncpa [#allocation6], 1
    %1106 = vsyncpa [#allocation9], 1
    %1107 = vsyncpa [#allocation12], 1
    %1108 = vsyncpa [#allocation4], 1

</llo_original>
